<compile_context>
chip_gen: v7x
topology: tpu7x:2x2x1
jax: 0.10.0
libtpu: 0.0.40
codegen_flags: <defaults>
</compile_context>

<pallas_src>
import functools
import math

import jax
import jax.numpy as jnp
from jax.experimental import pallas as pl
from jax.experimental.pallas import tpu as pltpu

_LANE = 128
_SUBLANE = 8
_BLOCK_TARGET_BYTES = 4 * 1024 * 1024   # ~4 MiB of input per grid step (HBM-roofline plateau)
_MAX_PACKED_WIDTH = 384                 # cap for the block-diagonal MXU segmented-sum trick


def _round_up(x, m):
    return (x + m - 1) // m * m


def _chip_config():
    """Best-effort generation detection: (num_tensorcores, vmem_limit, ws_budget)."""
    try:
        kind = jax.devices()[0].device_kind.lower()
    except Exception:
        kind = ""
    single_tc = any(t in kind for t in ("v5e", "v5 lite", "v5litepod", "v6e", "v6 lite"))
    num_cores = 1 if single_tc else 2    # v4/v5p/v7x expose 2 TCs; default to 2 when unsure
    if single_tc or any(t in kind for t in ("v2", "v3", "v4", "v5")):
        # 128 MiB physical VMEM generations: allow a bigger scoped window.
        return num_cores, 96 * 1024 * 1024, 48 * 1024 * 1024
    # v7x (64 MiB / TC) or unknown chip: stay conservative (works everywhere).
    return num_cores, 48 * 1024 * 1024, 24 * 1024 * 1024


def _choose_row_tile(nrows, width, itemsize, num_cores, ws_budget):
    """Row tile: ~_BLOCK_TARGET_BYTES of input per block, multiple of 8, VMEM-safe."""
    per_row = width * itemsize
    tile = max(_SUBLANE, (_BLOCK_TARGET_BYTES // per_row) // _SUBLANE * _SUBLANE)
    # Ceiling from double-buffered in+out blocks (f32 temps have ample headroom
    # below the vmem limit at the 4 MiB target).
    vmem_rows = (ws_budget // (4 * per_row)) // _SUBLANE * _SUBLANE
    tile = min(tile, max(_SUBLANE, vmem_rows))
    if num_cores > 1:
        # Keep >=2 grid steps per TensorCore so each core still double-buffers its DMA.
        min_steps = 2 * num_cores
        if nrows > min_steps * _SUBLANE:
            tile = min(tile, max(_SUBLANE, _round_up(pl.cdiv(nrows, min_steps), _SUBLANE)))
    return tile


def _ln_rows_kernel(x_ref, gamma_ref, beta_ref, o_ref, *, eps, n_features):
    """One LayerNorm row per sublane row; reduction over the lane axis (VPU/XLU)."""
    x = x_ref[...].astype(jnp.float32)                    # (T, F)
    mean = jnp.mean(x, axis=-1, keepdims=True)
    diff = x - mean
    # torch.std -> Bessel-corrected variance (ddof = 1).  TODO(synk): features==1
    # yields NaN in torch; we guard the divide and return beta instead.
    var = jnp.sum(diff * diff, axis=-1, keepdims=True) * (1.0 / max(n_features - 1, 1))
    inv = pl.reciprocal(jnp.sqrt(var) + eps, approx=True)  # EUP slot
    gamma = gamma_ref[...].astype(jnp.float32)             # (1, F)
    beta = beta_ref[...].astype(jnp.float32)               # (1, F)
    o_ref[...] = (diff * inv * gamma + beta).astype(o_ref.dtype)


def _ln_packed_kernel(x_ref, seg_ref, gamma_ref, beta_ref, o_ref, *, eps, n_features):
    """`pack` independent rows packed along the 128-lane axis (lane-dense I/O).

    Per-group sums use one MXU matmul against a block-diagonal 0/1 matrix, which
    also broadcasts the group statistic back to every lane of the group.  Rows
    stay fully independent, so masked partial blocks at the grid boundary are safe.
    """
    x = x_ref[...].astype(jnp.float32)                    # (T, W)
    seg = seg_ref[...]                                    # (W, W) block-diag ones
    # Split-f32 mean: x_hi is exactly representable in bf16 (no MXU operand
    # truncation error); x_lo carries only ~2^-16 relative error.  Avoids the
    # catastrophic-cancellation risk of a default-precision mean dot.
    x_hi = x.astype(jnp.bfloat16).astype(jnp.float32)
    x_lo = x - x_hi
    sum_x = (jnp.dot(x_hi, seg, preferred_element_type=jnp.float32)
             + jnp.dot(x_lo, seg, preferred_element_type=jnp.float32))
    mean = sum_x * (1.0 / n_features)
    diff = x - mean
    # Sum of squares: non-negative summands, default precision is fine.
    sumsq = jnp.dot(diff * diff, seg, preferred_element_type=jnp.float32)
    var = sumsq * (1.0 / max(n_features - 1, 1))          # ddof = 1
    inv = pl.reciprocal(jnp.sqrt(var) + eps, approx=True)  # EUP slot
    gamma = gamma_ref[...].astype(jnp.float32)             # (1, W), pre-tiled
    beta = beta_ref[...].astype(jnp.float32)               # (1, W), pre-tiled
    o_ref[...] = (diff * inv * gamma + beta).astype(o_ref.dtype)


def layer_norm(x, gamma, beta, *, eps=1e-6, row_tile=None):
    """LayerNorm over the last axis of x; gamma/beta shape (features,)."""
    orig_shape = x.shape
    features = orig_shape[-1]
    rows = math.prod(orig_shape[:-1]) if len(orig_shape) > 1 else 1
    x2 = x.reshape(rows, features)
    itemsize = jnp.dtype(x.dtype).itemsize

    num_cores, vmem_limit, ws_budget = _chip_config()
    compiler_params = pltpu.CompilerParams(
        dimension_semantics=("parallel",),
        vmem_limit_bytes=vmem_limit,
    )

    def _tile_for(nrows, width):
        tile = row_tile if row_tile is not None else _choose_row_tile(
            nrows, width, itemsize, num_cores, ws_budget)
        if tile >= nrows:
            tile = nrows       # single full block: exact dims are always legal
        return tile

    def run_rows(xr):
        nrows = xr.shape[0]
        tile = _tile_for(nrows, features)
        kernel = functools.partial(_ln_rows_kernel, eps=eps, n_features=features)
        return pl.pallas_call(
            kernel,
            out_shape=jax.ShapeDtypeStruct((nrows, features), x.dtype),
            grid=(pl.cdiv(nrows, tile),),                  # partial last block masked
            in_specs=[pl.BlockSpec((tile, features), lambda i: (i, 0)),
                      pl.BlockSpec((1, features), lambda i: (0, 0)),
                      pl.BlockSpec((1, features), lambda i: (0, 0))],
            out_specs=pl.BlockSpec((tile, features), lambda i: (i, 0)),
            compiler_params=compiler_params,
        )(xr, gamma.reshape(1, features), beta.reshape(1, features))

    def run_packed(xb, pack):
        # xb has rows % pack == 0; the row-major reshape below is a free bitcast.
        width = pack * features
        xp = xb.reshape(xb.shape[0] // pack, width)
        packed_rows = xp.shape[0]
        gamma_w = jnp.tile(gamma.reshape(-1), (pack,)).reshape(1, width)
        beta_w = jnp.tile(beta.reshape(-1), (pack,)).reshape(1, width)
        seg = jnp.kron(jnp.eye(pack, dtype=jnp.float32),
                       jnp.ones((features, features), dtype=jnp.float32))
        tile = _tile_for(packed_rows, width)
        kernel = functools.partial(_ln_packed_kernel, eps=eps, n_features=features)
        outp = pl.pallas_call(
            kernel,
            out_shape=jax.ShapeDtypeStruct((packed_rows, width), x.dtype),
            grid=(pl.cdiv(packed_rows, tile),),            # partial last block masked
            in_specs=[pl.BlockSpec((tile, width), lambda i: (i, 0)),
                      pl.BlockSpec((width, width), lambda i: (0, 0)),
                      pl.BlockSpec((1, width), lambda i: (0, 0)),
                      pl.BlockSpec((1, width), lambda i: (0, 0))],
            out_specs=pl.BlockSpec((tile, width), lambda i: (i, 0)),
            compiler_params=compiler_params,
        )(xp, seg, gamma_w, beta_w)
        return outp.reshape(xb.shape[0], features)

    # Lane packing: make the lane axis a multiple of 128 whenever gcd allows it
    # (width capped so the block-diagonal matrix / MXU cost stays trivial).
    pack = _LANE // math.gcd(features, _LANE)
    if pack * features > _MAX_PACKED_WIDTH:
        pack = 1

    if pack > 1:
        rem = rows % pack
        bulk = rows - rem
        parts = []
        if bulk > 0:
            xb = x2 if rem == 0 else jax.lax.slice_in_dim(x2, 0, bulk, axis=0)
            parts.append(run_packed(xb, pack))
        if rem > 0:
            # <= pack-1 rows: tiny rows-kernel call instead of padding the whole tensor.
            parts.append(run_rows(jax.lax.slice_in_dim(x2, bulk, rows, axis=0)))
        out2 = parts[0] if len(parts) == 1 else jnp.concatenate(parts, axis=0)
    else:
        out2 = run_rows(x2)

    return out2.reshape(orig_shape)


def _ref_layer_norm(x, gamma, beta, eps):
    mean = jnp.mean(x, axis=-1, keepdims=True)
    std = jnp.std(x, axis=-1, keepdims=True, ddof=1)   # torch.std semantics
    return gamma * (x - mean) / (std + eps) + beta


if __name__ == "__main__":
    key = jax.random.PRNGKey(0)
    batch, seq, hidden = 2, 8, 32

    # Parameters matching nn.Parameter(torch.ones/zeros) init.
    gamma = jnp.ones((hidden,), dtype=jnp.float32)
    beta = jnp.zeros((hidden,), dtype=jnp.float32)
    x = jax.random.normal(key, (batch, seq, hidden), dtype=jnp.float32)

    out = jax.block_until_ready(layer_norm(x, gamma, beta, eps=1e-6))
    ref = _ref_layer_norm(x, gamma, beta, 1e-6)
    assert jnp.allclose(out, ref, atol=5e-3, rtol=5e-3), "packed path mismatch"

    # Packed path with non-trivial gamma/beta (exercises parameter tiling).
    kg, kb = jax.random.split(jax.random.PRNGKey(2))
    gamma_r = 1.0 + 0.1 * jax.random.normal(kg, (hidden,), dtype=jnp.float32)
    beta_r = 0.1 * jax.random.normal(kb, (hidden,), dtype=jnp.float32)
    out_r = jax.block_until_ready(layer_norm(x, gamma_r, beta_r, eps=1e-6))
    ref_r = _ref_layer_norm(x, gamma_r, beta_r, 1e-6)
    assert jnp.allclose(out_r, ref_r, atol=5e-3, rtol=5e-3), "packed path (affine) mismatch"

    # Non-packed path (features >= 128, lane-dense by itself).
    hidden2 = 128
    x2 = jax.random.normal(jax.random.PRNGKey(1), (4, hidden2), dtype=jnp.float32)
    g2 = jnp.full((hidden2,), 1.5, dtype=jnp.float32)
    b2 = jnp.full((hidden2,), 0.25, dtype=jnp.float32)
    out2 = jax.block_until_ready(layer_norm(x2, g2, b2, eps=1e-6))
    ref2 = _ref_layer_norm(x2, g2, b2, 1e-6)
    assert jnp.allclose(out2, ref2, atol=2e-3, rtol=2e-3), "rows path mismatch"

    # rows % pack != 0: bulk packed call + small rows-kernel remainder (no full pad).
    x3 = jax.random.normal(jax.random.PRNGKey(3), (3, 5, hidden), dtype=jnp.float32)
    out3 = jax.block_until_ready(layer_norm(x3, gamma_r, beta_r, eps=1e-6))
    ref3 = _ref_layer_norm(x3, gamma_r, beta_r, 1e-6)
    assert jnp.allclose(out3, ref3, atol=5e-3, rtol=5e-3), "remainder split mismatch"

    # Multi-step grid with a masked partial last block (row_tile override for test only).
    x4 = jax.random.normal(jax.random.PRNGKey(4), (10, 8, hidden), dtype=jnp.float32)
    out4 = jax.block_until_ready(layer_norm(x4, gamma_r, beta_r, eps=1e-6, row_tile=8))
    ref4 = _ref_layer_norm(x4, gamma_r, beta_r, 1e-6)
    assert jnp.allclose(out4, ref4, atol=5e-3, rtol=5e-3), "partial-block mismatch"

    print("KERNEL_OK")
</pallas_src>

<mosaic_0001>
module attributes {stable_mosaic.version = 11 : i64} {
  func.func @_ln_packed_kernel(%arg0: i32, %arg1: memref<4x128xf32, #tpu.memory_space<vmem>>, %arg2: memref<128x128xf32, #tpu.memory_space<vmem>>, %arg3: memref<1x128xf32, #tpu.memory_space<vmem>>, %arg4: memref<1x128xf32, #tpu.memory_space<vmem>>, %arg5: memref<4x128xf32, #tpu.memory_space<vmem>>) attributes {dimension_semantics = [#tpu.dimension_semantics<parallel>], iteration_bounds = array<i64: 1>, scalar_prefetch = 0 : i64, scratch_operands = 0 : i64, tpu.core_type = #tpu.core_type<tc>, window_params = [{transform_indices = @transform_0, window_bounds = array<i64: 4, 128>}, {pipeline_mode = #tpu.pipeline_mode<synchronous>, transform_indices = @transform_1, window_bounds = array<i64: 128, 128>}, {pipeline_mode = #tpu.pipeline_mode<synchronous>, transform_indices = @transform_2, window_bounds = array<i64: 1, 128>}, {pipeline_mode = #tpu.pipeline_mode<synchronous>, transform_indices = @transform_3, window_bounds = array<i64: 1, 128>}, {transform_indices = @transform_4, window_bounds = array<i64: 4, 128>}]} {
    %c0 = arith.constant 0 : index
    %c0_0 = arith.constant 0 : index
    %0 = vector.load %arg1[%c0, %c0_0] : memref<4x128xf32, #tpu.memory_space<vmem>>, vector<4x128xf32>
    %c0_1 = arith.constant 0 : index
    %c0_2 = arith.constant 0 : index
    %1 = vector.load %arg2[%c0_1, %c0_2] : memref<128x128xf32, #tpu.memory_space<vmem>>, vector<128x128xf32>
    %2 = arith.truncf %0 : vector<4x128xf32> to vector<4x128xbf16>
    %3 = arith.extf %2 : vector<4x128xbf16> to vector<4x128xf32>
    %4 = arith.subf %0, %3 : vector<4x128xf32>
    %cst = arith.constant dense<0.000000e+00> : vector<4x128xf32>
    %5 = tpu.matmul %3, %1, %cst {dimension_numbers = #tpu.dot_dimension_numbers<[1], [0], [0], [1], [0, 0, 1, 1], [], []>} : vector<4x128xf32>, vector<128x128xf32>, vector<4x128xf32> -> vector<4x128xf32>
    %cst_3 = arith.constant dense<0.000000e+00> : vector<4x128xf32>
    %6 = tpu.matmul %4, %1, %cst_3 {dimension_numbers = #tpu.dot_dimension_numbers<[1], [0], [0], [1], [0, 0, 1, 1], [], []>} : vector<4x128xf32>, vector<128x128xf32>, vector<4x128xf32> -> vector<4x128xf32>
    %7 = arith.addf %5, %6 : vector<4x128xf32>
    %cst_4 = arith.constant 3.125000e-02 : f32
    %8 = vector.broadcast %cst_4 : f32 to vector<4x128xf32>
    %9 = arith.mulf %7, %8 : vector<4x128xf32>
    %10 = arith.subf %0, %9 : vector<4x128xf32>
    %11 = arith.mulf %10, %10 : vector<4x128xf32>
    %cst_5 = arith.constant dense<0.000000e+00> : vector<4x128xf32>
    %12 = tpu.matmul %11, %1, %cst_5 {dimension_numbers = #tpu.dot_dimension_numbers<[1], [0], [0], [1], [0, 0, 1, 1], [], []>} : vector<4x128xf32>, vector<128x128xf32>, vector<4x128xf32> -> vector<4x128xf32>
    %cst_6 = arith.constant 0.0322580636 : f32
    %13 = vector.broadcast %cst_6 : f32 to vector<4x128xf32>
    %14 = arith.mulf %12, %13 : vector<4x128xf32>
    %15 = math.sqrt %14 : vector<4x128xf32>
    %cst_7 = arith.constant 9.99999997E-7 : f32
    %16 = vector.broadcast %cst_7 : f32 to vector<4x128xf32>
    %17 = arith.addf %15, %16 : vector<4x128xf32>
    %18 = tpu.reciprocal %17 {approx = true} : vector<4x128xf32> -> vector<4x128xf32>
    %c0_8 = arith.constant 0 : index
    %c0_9 = arith.constant 0 : index
    %19 = vector.load %arg3[%c0_8, %c0_9] : memref<1x128xf32, #tpu.memory_space<vmem>>, vector<1x128xf32>
    %c0_10 = arith.constant 0 : index
    %c0_11 = arith.constant 0 : index
    %20 = vector.load %arg4[%c0_10, %c0_11] : memref<1x128xf32, #tpu.memory_space<vmem>>, vector<1x128xf32>
    %21 = arith.mulf %10, %18 : vector<4x128xf32>
    %22 = vector.broadcast %19 : vector<1x128xf32> to vector<4x128xf32>
    %23 = arith.mulf %21, %22 : vector<4x128xf32>
    %24 = vector.broadcast %20 : vector<1x128xf32> to vector<4x128xf32>
    %25 = arith.addf %23, %24 : vector<4x128xf32>
    %c0_12 = arith.constant 0 : index
    %c0_13 = arith.constant 0 : index
    %26 = vector.load %arg5[%c0_12, %c0_13] : memref<4x128xf32, #tpu.memory_space<vmem>>, vector<4x128xf32>
    tpu.vector_store %arg5[%c0_12, %c0_13], %25 {strides = array<i32>} : memref<4x128xf32, #tpu.memory_space<vmem>>, vector<4x128xf32>,
    return
  }
  func.func @transform_0(%arg0: i32) -> (i32, i32) {
    %c0_i32 = arith.constant 0 : i32
    %c0_i32_0 = arith.constant 0 : i32
    return %arg0, %c0_i32 : i32, i32
  }
  func.func @transform_1(%arg0: i32) -> (i32, i32) {
    %c0_i32 = arith.constant 0 : i32
    %c0_i32_0 = arith.constant 0 : i32
    %c0_i32_1 = arith.constant 0 : i32
    return %c0_i32, %c0_i32_0 : i32, i32
  }
  func.func @transform_2(%arg0: i32) -> (i32, i32) {
    %c0_i32 = arith.constant 0 : i32
    %c0_i32_0 = arith.constant 0 : i32
    %c0_i32_1 = arith.constant 0 : i32
    return %c0_i32, %c0_i32_0 : i32, i32
  }
  func.func @transform_3(%arg0: i32) -> (i32, i32) {
    %c0_i32 = arith.constant 0 : i32
    %c0_i32_0 = arith.constant 0 : i32
    %c0_i32_1 = arith.constant 0 : i32
    return %c0_i32, %c0_i32_0 : i32, i32
  }
  func.func @transform_4(%arg0: i32) -> (i32, i32) {
    %c0_i32 = arith.constant 0 : i32
    %c0_i32_0 = arith.constant 0 : i32
    return %arg0, %c0_i32 : i32, i32
  }
}

</mosaic_0001>

<llo_original>
// kernel: tpu_custom_call.1
$region0: #{tpu_custom_call.1}
  #allocation0 [shape = 'u32[]', space=smem, size = 0x4, offset = 0x4, fixed_abs, tag = 'smem constant byte address 0x4 - core index']
  #allocation1 [shape = 'u32[144,128]{1,0:T(1,128)}', space=vmem, size = 0x12000, scoped, tag = 'internal scratch']
  %s0 = inlined_call_operand.hbm [shape: f32[4,128], index: 0, kind: input, shape index: {}]
  %s1 = inlined_call_operand.hbm [shape: f32[128,128], index: 1, kind: input, shape index: {}]
  %s2 = inlined_call_operand.vmem [shape: f32[1,128], index: 2, kind: input, shape index: {}]
  %s3 = inlined_call_operand.vmem [shape: f32[1,128], index: 3, kind: input, shape index: {}]
  %s4 = inlined_call_operand.hbm [shape: f32[4,128], index: 4, kind: output, shape index: {}]
  %s5 = sld [smem:[#allocation0]]
  $region34: #{tpu_custom_call.1} parent=0
    _
  %s7 = ssub.s32 1, %s5
  %s8 = scalar_select 0, %s7, %s5
  $region1: #{tpu_custom_call.1} parent=0
    #allocation2 [shape = 'u8[2048]{0}', space=vmem, size = 0x800, scoped, tag = 'input window, operand 0, single buffered']
    #allocation3 [shape = 's32[1]{0}', space=sflag, size = 0x4, scoped, tag = 'scoped memory for tpu_custom_call.1']
    #allocation4 [shape = 's32[1]{0}', space=sflag, size = 0x4, scoped, tag = 'scoped memory for tpu_custom_call.1']
    #allocation5 [shape = 'u8[65536]{0}', space=vmem, size = 0x10000, scoped, tag = 'input window, operand 1, single buffered']
    #allocation6 [shape = 's32[1]{0}', space=sflag, size = 0x4, scoped, tag = 'scoped memory for tpu_custom_call.1']
    #allocation7 [shape = 'u8[2048]{0}', space=vmem, size = 0x800, scoped, tag = 'output window, operand 0, single buffered']
    %9 = vsyncpa [#allocation3], 0
    %10 = vsyncpa [#allocation6], 0
    %11 = vsyncpa [#allocation4], 0
    // Predicated region
    $region2: #{tpu_custom_call.1} parent=1 // pred_check
      _
    $region3: #{tpu_custom_call.1} parent=1 // pred_check_branch
      %13 = sbr.rel (0) target = $region5
    $region4: #{tpu_custom_call.1} parent=1 // pred_region
      %s15 = ssub.s32 64, 64
      %16 = vsyncadd [#allocation3], %s15
      %s18 = sshll.u32 [#allocation2], 4
      %s19 = int_to_ptr.vmem [resolvable:$true] %s18
      %21 = dma.hbm_to_vmem [thread:$0]  %s0, 64, %s19, [#allocation3]
    $region5: #{tpu_custom_call.1} parent=1 // pred_fallthru
      _
    // Predicated region
    $region6: #{tpu_custom_call.1} parent=1 // pred_check
      _
    $region7: #{tpu_custom_call.1} parent=1 // pred_check_branch
      %23 = sbr.rel (0) target = $region9
    $region8: #{tpu_custom_call.1} parent=1 // pred_region
      %s25 = ssub.s32 2048, 2048
      %26 = vsyncadd [#allocation6], %s25
      %s27 = sshll.u32 [#allocation5], 4
      %s28 = int_to_ptr.vmem [resolvable:$true] %s27
      %33 = dma.hbm_to_vmem [thread:$0]  %s1, 2048, %s28, [#allocation6], 128, 128, 8
    $region9: #{tpu_custom_call.1} parent=1 // pred_fallthru
      _
    // Predicated region
    $region10: #{tpu_custom_call.1} parent=1 // pred_check
      _
    $region11: #{tpu_custom_call.1} parent=1 // pred_check_branch
      %35 = sbr.rel (0) target = $region13
    $region12: #{tpu_custom_call.1} parent=1 // pred_region
      _
    $region13: #{tpu_custom_call.1} parent=1 // pred_fallthru
      _
    // Predicated region
    $region14: #{tpu_custom_call.1} parent=1 // pred_check
      _
    $region15: #{tpu_custom_call.1} parent=1 // pred_check_branch
      %37 = sbr.rel (0) target = $region17
    $region16: #{tpu_custom_call.1} parent=1 // pred_region
      _
    $region17: #{tpu_custom_call.1} parent=1 // pred_fallthru
      _
    // Predicated region
    $region18: #{tpu_custom_call.1} parent=1 // pred_check
      _
    $region19: #{tpu_custom_call.1} parent=1 // pred_check_branch
      %39 = sbr.rel (0) target = $region21
    $region20: #{tpu_custom_call.1} parent=1 // pred_region
      %40 = dma.done [#allocation3], 64
    $region21: #{tpu_custom_call.1} parent=1 // pred_fallthru
      _
    // Predicated region
    $region22: #{tpu_custom_call.1} parent=1 // pred_check
      _
    $region23: #{tpu_custom_call.1} parent=1 // pred_check_branch
      %42 = sbr.rel (0) target = $region25
    $region24: #{tpu_custom_call.1} parent=1 // pred_region
      %43 = dma.done [#allocation6], 2048
    $region25: #{tpu_custom_call.1} parent=1 // pred_fallthru
      _
    %v44 = vld [vmem:[#allocation2] sm:$0xf]
    %v45 = vld [vmem:[#allocation5] sm:$0xff]
    %v46 = vld [vmem:[#allocation5 + $0x8] sm:$0xff]
    %v47 = vld [vmem:[#allocation5 + $0x10] sm:$0xff]
    %v48 = vld [vmem:[#allocation5 + $0x18] sm:$0xff]
    %v49 = vld [vmem:[#allocation5 + $0x20] sm:$0xff]
    %v50 = vld [vmem:[#allocation5 + $0x28] sm:$0xff]
    %v51 = vld [vmem:[#allocation5 + $0x30] sm:$0xff]
    %v52 = vld [vmem:[#allocation5 + $0x38] sm:$0xff]
    %v53 = vld [vmem:[#allocation5 + $0x40] sm:$0xff]
    %v54 = vld [vmem:[#allocation5 + $0x48] sm:$0xff]
    %v55 = vld [vmem:[#allocation5 + $0x50] sm:$0xff]
    %v56 = vld [vmem:[#allocation5 + $0x58] sm:$0xff]
    %v57 = vld [vmem:[#allocation5 + $0x60] sm:$0xff]
    %v58 = vld [vmem:[#allocation5 + $0x68] sm:$0xff]
    %v59 = vld [vmem:[#allocation5 + $0x70] sm:$0xff]
    %v60 = vld [vmem:[#allocation5 + $0x78] sm:$0xff]
    %v61 = vpack.c.bf16 %v44, %v44
    %v62 = vunpack.c.l.bf16 %v61
    %v63 = vsub.f32 %v44, %v62
    %64 = vmatprep.subr.mxu0 0.0
    %65 = vmatpush1.msra.mxu0 %v45
    %66 = vmatprep.subr.mxu0 0.0
    %67 = vmatpush1.msra.mxu0 %v46
    %68 = vmatprep.subr.mxu0 0.0
    %69 = vmatpush1.msra.mxu0 %v47
    %70 = vmatprep.subr.mxu0 0.0
    %71 = vmatpush1.msra.mxu0 %v48
    %72 = vmatprep.subr.mxu0 0.0
    %73 = vmatpush1.msra.mxu0 %v49
    %74 = vmatprep.subr.mxu0 0.0
    %75 = vmatpush1.msra.mxu0 %v50
    %76 = vmatprep.subr.mxu0 0.0
    %77 = vmatpush1.msra.mxu0 %v51
    %78 = vmatprep.subr.mxu0 0.0
    %79 = vmatpush1.msra.mxu0 %v52
    %80 = vmatprep.subr.mxu0 0.0
    %81 = vmatpush1.msra.mxu0 %v53
    %82 = vmatprep.subr.mxu0 0.0
    %83 = vmatpush1.msra.mxu0 %v54
    %84 = vmatprep.subr.mxu0 0.0
    %85 = vmatpush1.msra.mxu0 %v55
    %86 = vmatprep.subr.mxu0 0.0
    %87 = vmatpush1.msra.mxu0 %v56
    %88 = vmatprep.subr.mxu0 0.0
    %89 = vmatpush1.msra.mxu0 %v57
    %90 = vmatprep.subr.mxu0 0.0
    %91 = vmatpush1.msra.mxu0 %v58
    %92 = vmatprep.subr.mxu0 0.0
    %93 = vmatpush1.msra.mxu0 %v59
    %94 = vmatprep.subr.mxu0 0.0
    %95 = vmatpush1.msra.mxu0 %v60
    %96 = vmatprep.subr.mxu0 0.0
    %97 = vmatpush1.msra.mxu0 0.0
    %98 = vmatprep.subr.mxu0 0.0
    %99 = vmatpush1.msra.mxu0 0.0
    %100 = vmatprep.subr.mxu0 0.0
    %101 = vmatpush1.msra.mxu0 0.0
    %102 = vmatprep.subr.mxu0 0.0
    %103 = vmatpush1.msra.mxu0 0.0
    %104 = vmatprep.subr.mxu0 0.0
    %105 = vmatpush1.msra.mxu0 0.0
    %106 = vmatprep.subr.mxu0 0.0
    %107 = vmatpush1.msra.mxu0 0.0
    %108 = vmatprep.subr.mxu0 0.0
    %109 = vmatpush1.msra.mxu0 0.0
    %110 = vmatprep.subr.mxu0 0.0
    %111 = vmatpush1.msra.mxu0 0.0
    %112 = vmatprep.subr.mxu0 0.0
    %113 = vmatpush1.msra.mxu0 0.0
    %114 = vmatprep.subr.mxu0 0.0
    %115 = vmatpush1.msra.mxu0 0.0
    %116 = vmatprep.subr.mxu0 0.0
    %117 = vmatpush1.msra.mxu0 0.0
    %118 = vmatprep.subr.mxu0 0.0
    %119 = vmatpush1.msra.mxu0 0.0
    %120 = vmatprep.subr.mxu0 0.0
    %121 = vmatpush1.msra.mxu0 0.0
    %122 = vmatprep.subr.mxu0 0.0
    %123 = vmatpush1.msra.mxu0 0.0
    %124 = vmatprep.subr.mxu0 0.0
    %125 = vmatpush1.msra.mxu0 0.0
    %126 = vmatprep.subr.mxu0 0.0
    %127 = vmatpush1.msra.mxu0 0.0
    %128 = vmatprep.mubr.f32.mxu0 0.0
    %129 = vmatmul.mubr.f32.gmra.mrb[0].mxu0 %v63
    %v130 = vpop.f32.mrb[0].mxu0
    %v131 = vadd.f32 0.0, %v130
    %v132 = vpop.f32.mrb[0].mxu0
    %133 = vdwg.mxu0
    %134 = vmatprep.subr.mxu0 0.0
    %135 = vmatpush1.msra.mxu0 %v45
    %136 = vmatprep.subr.mxu0 0.0
    %137 = vmatpush1.msra.mxu0 %v46
    %138 = vmatprep.subr.mxu0 0.0
    %139 = vmatpush1.msra.mxu0 %v47
    %140 = vmatprep.subr.mxu0 0.0
    %141 = vmatpush1.msra.mxu0 %v48
    %142 = vmatprep.subr.mxu0 0.0
    %143 = vmatpush1.msra.mxu0 %v49
    %144 = vmatprep.subr.mxu0 0.0
    %145 = vmatpush1.msra.mxu0 %v50
    %146 = vmatprep.subr.mxu0 0.0
    %147 = vmatpush1.msra.mxu0 %v51
    %148 = vmatprep.subr.mxu0 0.0
    %149 = vmatpush1.msra.mxu0 %v52
    %150 = vmatprep.subr.mxu0 0.0
    %151 = vmatpush1.msra.mxu0 %v53
    %152 = vmatprep.subr.mxu0 0.0
    %153 = vmatpush1.msra.mxu0 %v54
    %154 = vmatprep.subr.mxu0 0.0
    %155 = vmatpush1.msra.mxu0 %v55
    %156 = vmatprep.subr.mxu0 0.0
    %157 = vmatpush1.msra.mxu0 %v56
    %158 = vmatprep.subr.mxu0 0.0
    %159 = vmatpush1.msra.mxu0 %v57
    %160 = vmatprep.subr.mxu0 0.0
    %161 = vmatpush1.msra.mxu0 %v58
    %162 = vmatprep.subr.mxu0 0.0
    %163 = vmatpush1.msra.mxu0 %v59
    %164 = vmatprep.subr.mxu0 0.0
    %165 = vmatpush1.msra.mxu0 %v60
    %166 = vmatprep.subr.mxu0 0.0
    %167 = vmatpush1.msra.mxu0 0.0
    %168 = vmatprep.subr.mxu0 0.0
    %169 = vmatpush1.msra.mxu0 0.0
    %170 = vmatprep.subr.mxu0 0.0
    %171 = vmatpush1.msra.mxu0 0.0
    %172 = vmatprep.subr.mxu0 0.0
    %173 = vmatpush1.msra.mxu0 0.0
    %174 = vmatprep.subr.mxu0 0.0
    %175 = vmatpush1.msra.mxu0 0.0
    %176 = vmatprep.subr.mxu0 0.0
    %177 = vmatpush1.msra.mxu0 0.0
    %178 = vmatprep.subr.mxu0 0.0
    %179 = vmatpush1.msra.mxu0 0.0
    %180 = vmatprep.subr.mxu0 0.0
    %181 = vmatpush1.msra.mxu0 0.0
    %182 = vmatprep.subr.mxu0 0.0
    %183 = vmatpush1.msra.mxu0 0.0
    %184 = vmatprep.subr.mxu0 0.0
    %185 = vmatpush1.msra.mxu0 0.0
    %186 = vmatprep.subr.mxu0 0.0
    %187 = vmatpush1.msra.mxu0 0.0
    %188 = vmatprep.subr.mxu0 0.0
    %189 = vmatpush1.msra.mxu0 0.0
    %190 = vmatprep.subr.mxu0 0.0
    %191 = vmatpush1.msra.mxu0 0.0
    %192 = vmatprep.subr.mxu0 0.0
    %193 = vmatpush1.msra.mxu0 0.0
    %194 = vmatprep.subr.mxu0 0.0
    %195 = vmatpush1.msra.mxu0 0.0
    %196 = vmatprep.subr.mxu0 0.0
    %197 = vmatpush1.msra.mxu0 0.0
    %198 = vmatprep.mubr.f32.mxu0 0.0
    %199 = vmatmul.mubr.f32.gmra.mrb[0].mxu0 %v62
    %v200 = vpop.f32.mrb[0].mxu0
    %v201 = vadd.f32 %v131, %v200
    %v202 = vpop.f32.mrb[0].mxu0
    %203 = vdwg.mxu0
    %v204 = vmul.f32 %v201, 0.03125
    %v205 = vsub.f32 %v44, %v204
    %v206 = vmul.f32 %v205, %v205
    %207 = vmatprep.subr.mxu0 0.0
    %208 = vmatpush1.msra.mxu0 %v45
    %209 = vmatprep.subr.mxu0 0.0
    %210 = vmatpush1.msra.mxu0 %v46
    %211 = vmatprep.subr.mxu0 0.0
    %212 = vmatpush1.msra.mxu0 %v47
    %213 = vmatprep.subr.mxu0 0.0
    %214 = vmatpush1.msra.mxu0 %v48
    %215 = vmatprep.subr.mxu0 0.0
    %216 = vmatpush1.msra.mxu0 %v49
    %217 = vmatprep.subr.mxu0 0.0
    %218 = vmatpush1.msra.mxu0 %v50
    %219 = vmatprep.subr.mxu0 0.0
    %220 = vmatpush1.msra.mxu0 %v51
    %221 = vmatprep.subr.mxu0 0.0
    %222 = vmatpush1.msra.mxu0 %v52
    %223 = vmatprep.subr.mxu0 0.0
    %224 = vmatpush1.msra.mxu0 %v53
    %225 = vmatprep.subr.mxu0 0.0
    %226 = vmatpush1.msra.mxu0 %v54
    %227 = vmatprep.subr.mxu0 0.0
    %228 = vmatpush1.msra.mxu0 %v55
    %229 = vmatprep.subr.mxu0 0.0
    %230 = vmatpush1.msra.mxu0 %v56
    %231 = vmatprep.subr.mxu0 0.0
    %232 = vmatpush1.msra.mxu0 %v57
    %233 = vmatprep.subr.mxu0 0.0
    %234 = vmatpush1.msra.mxu0 %v58
    %235 = vmatprep.subr.mxu0 0.0
    %236 = vmatpush1.msra.mxu0 %v59
    %237 = vmatprep.subr.mxu0 0.0
    %238 = vmatpush1.msra.mxu0 %v60
    %239 = vmatprep.subr.mxu0 0.0
    %240 = vmatpush1.msra.mxu0 0.0
    %241 = vmatprep.subr.mxu0 0.0
    %242 = vmatpush1.msra.mxu0 0.0
    %243 = vmatprep.subr.mxu0 0.0
    %244 = vmatpush1.msra.mxu0 0.0
    %245 = vmatprep.subr.mxu0 0.0
    %246 = vmatpush1.msra.mxu0 0.0
    %247 = vmatprep.subr.mxu0 0.0
    %248 = vmatpush1.msra.mxu0 0.0
    %249 = vmatprep.subr.mxu0 0.0
    %250 = vmatpush1.msra.mxu0 0.0
    %251 = vmatprep.subr.mxu0 0.0
    %252 = vmatpush1.msra.mxu0 0.0
    %253 = vmatprep.subr.mxu0 0.0
    %254 = vmatpush1.msra.mxu0 0.0
    %255 = vmatprep.subr.mxu0 0.0
    %256 = vmatpush1.msra.mxu0 0.0
    %257 = vmatprep.subr.mxu0 0.0
    %258 = vmatpush1.msra.mxu0 0.0
    %259 = vmatprep.subr.mxu0 0.0
    %260 = vmatpush1.msra.mxu0 0.0
    %261 = vmatprep.subr.mxu0 0.0
    %262 = vmatpush1.msra.mxu0 0.0
    %263 = vmatprep.subr.mxu0 0.0
    %264 = vmatpush1.msra.mxu0 0.0
    %265 = vmatprep.subr.mxu0 0.0
    %266 = vmatpush1.msra.mxu0 0.0
    %267 = vmatprep.subr.mxu0 0.0
    %268 = vmatpush1.msra.mxu0 0.0
    %269 = vmatprep.subr.mxu0 0.0
    %270 = vmatpush1.msra.mxu0 0.0
    %271 = vmatprep.mubr.f32.mxu0 0.0
    %272 = vmatmul.mubr.f32.gmra.mrb[0].mxu0 %v206
    %v273 = vpop.f32.mrb[0].mxu0
    %v274 = vadd.f32 0.0, %v273
    %v275 = vpop.f32.mrb[0].mxu0
    %276 = vdwg.mxu0
    %v277 = vmul.f32 %v274, 0.032258064
    %v278 = vrsqrt.pop %v277
    %v279 = vmul.f32 %v277, %v278
    %vm280 = vcmp.eq.f32.partialorder %v277, inf
    %v281 = vsel %vm280, %v277, %v279
    %vm282 = vcmp.eq.f32.partialorder %v277, 0.0
    %v283 = vand.u32 %v277, 2147483648
    %v284 = vsel %vm282, %v283, %v281
    %v285 = vadd.f32 %v284, 1e-06
    %v286 = vrcp.pop %v285
    %v287 = vld [vmem:[%s2] sm:$0x1]
    %v288 = vld [vmem:[%s3] sm:$0x1]
    %v289 = vmul.f32 %v205, %v286
    %v291 = vlaneseq
    %v292 = vshrl.u32 %v291, 7
    %v293 = vsub.s32 0, %v292
    %v294 = vrot.slane %v287, %v293
    %v296 = vmul.f32 %v289, %v294
    %v298 = vlaneseq
    %v299 = vshrl.u32 %v298, 7
    %v300 = vsub.s32 0, %v299
    %v301 = vrot.slane %v288, %v300
    %v303 = vadd.f32 %v296, %v301
    %304 = vst [vmem:[#allocation7] sm:$0xf] %v303
    // Predicated region
    $region26: #{tpu_custom_call.1} parent=1 // pred_check
      _
    $region27: #{tpu_custom_call.1} parent=1 // pred_check_branch
      %306 = sbr.rel (0) target = $region29
    $region28: #{tpu_custom_call.1} parent=1 // pred_region
      %s308 = ssub.s32 64, 64
      %309 = vsyncadd [#allocation4], %s308
      %s311 = sshll.u32 [#allocation7], 4
      %s312 = int_to_ptr.vmem [resolvable:$true] %s311
      %314 = dma.vmem_to_hbm [thread:$0]  %s312, 64, %s4, [#allocation4]
    $region29: #{tpu_custom_call.1} parent=1 // pred_fallthru
      _
    // Predicated region
    $region30: #{tpu_custom_call.1} parent=1 // pred_check
      _
    $region31: #{tpu_custom_call.1} parent=1 // pred_check_branch
      %316 = sbr.rel (0) target = $region33
    $region32: #{tpu_custom_call.1} parent=1 // pred_region
      %317 = dma.done [#allocation4], 64
    $region33: #{tpu_custom_call.1} parent=1 // pred_fallthru
      _
    %318 = vsyncpa [#allocation3], 1
    %319 = vsyncpa [#allocation6], 1
    %320 = vsyncpa [#allocation4], 1

</llo_original>
